<compile_context>
chip_gen: v7x
topology: tpu7x:2x2x1
jax: 0.10.0
libtpu: 0.0.40
codegen_flags: <defaults>
</compile_context>

<pallas_src>
import numpy as np
import jax
import jax.numpy as jnp
from jax.experimental import pallas as pl
from jax.experimental.pallas import tpu as pltpu


def _pair(v):
    if isinstance(v, (tuple, list)):
        return tuple(v)
    return (v, v)


def _rup(v, m):
    return -(-v // m) * m


def _make_kernel(KH, KW, SH, SW, Hout, Wout, NQW):
    n_rw = min(SW, KW)

    def kernel(x_ref, d_ref, dc_ref, invp_ref, o_ref, w_ref):
        # x_ref:    (SH, SW, TC, Hq, Wq)   stride-phase-deinterleaved, zero-padded input
        # d_ref:    (SH, SW, Hq, Wq)       stride-phase-deinterleaved, zero-padded depth
        # dc_ref:   (NQW, Hout, Wq)        centre depth, pre-placed at lanes [q, q+Wout)
        # invp_ref: (NQW, Hout, Wq)        1/pool_size, pre-placed (zeros elsewhere)
        # o_ref:    (TC, Hout, Wout)
        # w_ref:    (KH, KW, Hout, Wq) f32 scratch; persists across the channel axis
        tc = x_ref.shape[2]
        wq = x_ref.shape[-1]

        # ---- hoisted, channel-independent depth weights (first channel step only)
        @pl.when(pl.program_id(2) == 0)
        def _compute_weights():
            for kh in range(KH):
                rh, qh = kh % SH, kh // SH
                for kw in range(KW):
                    rw, qw = kw % SW, kw // SW
                    d_tap = d_ref[rh, rw, qh:qh + Hout, :]        # (Hout, Wq), lane offset 0
                    w_ref[kh, kw, :, :] = (
                        jnp.exp(-jnp.abs(dc_ref[qw] - d_tap)) * invp_ref[qw])

        # ---- accumulate: full-width slab loads only, one accumulator per qw class
        accs = [jnp.zeros((tc, Hout, wq), jnp.float32) for _ in range(NQW)]
        for kh in range(KH):
            rh, qh = kh % SH, kh // SH
            for rw in range(n_rw):
                x_slab = x_ref[rh, rw, :, qh:qh + Hout, :].astype(jnp.float32)
                for qw in range((KW - 1 - rw) // SW + 1):
                    kw = qw * SW + rw
                    accs[qw] = accs[qw] + x_slab * w_ref[kh, kw, :, :][None, :, :]

        # ---- epilogue: one lane slice per qw class (weights already carry 1/pool_size)
        out = accs[0][:, :, 0:Wout]
        for qw in range(1, NQW):
            out = out + accs[qw][:, :, qw:qw + Wout]
        o_ref[...] = out.astype(o_ref.dtype)

    return kernel


def depth_avg_pooling(x_nchw, depth_n1hw, kernel_size, stride=1, padding=0,
                      *, vmem_block_budget_bytes=None, max_channels_per_tile=None):
    KH, KW = _pair(kernel_size)
    SH, SW = _pair(stride)
    PH, PW = _pair(padding)

    N, C, H, W = x_nchw.shape
    Hout = (H + 2 * PH - KH) // SH + 1
    Wout = (W + 2 * PW - KW) // SW + 1
    assert Hout >= 1 and Wout >= 1, "empty output"
    Hp, Wp = H + 2 * PH, W + 2 * PW
    Hq, Wq = -(-Hp // SH), -(-Wp // SW)              # ceil(Hp/SH), ceil(Wp/SW)
    Hp2, Wp2 = Hq * SH, Wq * SW                      # padded up to stride multiples
    NQW = (KW - 1) // SW + 1                         # number of qw = kw // SW classes
    assert (NQW - 1) + Wout <= Wq and (KH - 1) // SH + Hout <= Hq

    # ---- generation-aware VMEM sizing --------------------------------------
    try:
        cap = int(getattr(pltpu.get_tpu_info(), "vmem_capacity_bytes",
                          128 * 1024 * 1024))
    except Exception:
        cap = 128 * 1024 * 1024
    vmem_limit = max(32 * 1024 * 1024, min(cap * 3 // 4, 96 * 1024 * 1024))
    if vmem_block_budget_bytes is None:
        vmem_block_budget_bytes = min(vmem_limit // 2, 24 * 1024 * 1024)

    itemsize = x_nchw.dtype.itemsize
    Hq_t, Wq_t = _rup(Hq, 8), _rup(Wq, 128)
    Hout_t, Wout_t = _rup(Hout, 8), _rup(Wout, 128)
    per_ch = (2 * SH * SW * Hq_t * Wq_t * itemsize       # x block, double-buffered
              + 2 * Hout_t * Wout_t * itemsize           # out block, double-buffered
              + (NQW + 1) * Hout_t * Wq_t * 4)           # f32 accumulators + temp
    fixed = (2 * SH * SW * Hq_t * Wq_t * 4               # depth block
             + KH * KW * Hout_t * Wq_t * 4               # hoisted weight scratch
             + 4 * NQW * Hout_t * Wq_t * 4)              # dc / inv_pool blocks
    avail = vmem_block_budget_bytes - fixed
    tc = int(max(1, min(C, avail // per_ch))) if avail >= per_ch else 1
    if max_channels_per_tile is not None:
        tc = max(1, min(tc, int(max_channels_per_tile)))
    # prefer an exact divisor of C when one sits close to the budgeted tile,
    # otherwise zero-pad the channel axis (avoids the tc -> 1 divisibility cliff)
    best_div = max(dv for dv in range(1, tc + 1) if C % dv == 0)
    if 4 * best_div >= 3 * tc:
        tc = best_div
    nct = -(-C // tc)
    # megacore: with a single batch element, split the channel-tile axis into a
    # parallel outer axis so both TensorCores (v7x) get work.
    CO = 2 if (N == 1 and nct >= 2) else 1
    nct = _rup(nct, CO)
    CI = nct // CO
    Cp = nct * tc

    d = depth_n1hw.reshape(N, H, W).astype(jnp.float32)

    # ---- wrapper pass: zero pad + stride-phase deinterleave (space-to-batch) ----
    x_pad = jnp.pad(x_nchw, ((0, 0), (0, Cp - C),
                             (PH, Hp2 - H - PH), (PW, Wp2 - W - PW)))
    d_pad = jnp.pad(d, ((0, 0), (PH, Hp2 - H - PH), (PW, Wp2 - W - PW)))
    if SH == 1 and SW == 1:
        # fast path: pure (free) reshape, no extra HBM pass
        x_ph = x_pad.reshape(N, 1, 1, Cp, Hq, Wq)
        d_ph = d_pad.reshape(N, 1, 1, Hq, Wq)
    else:
        x_ph = x_pad.reshape(N, Cp, Hq, SH, Wq, SW).transpose(0, 3, 5, 1, 2, 4)
        d_ph = d_pad.reshape(N, Hq, SH, Wq, SW).transpose(0, 2, 4, 1, 3)

    # ---- data-independent glue: clipped-window-centre depth & 1/pool_size ----
    ph_idx = np.arange(Hout)
    pw_idx = np.arange(Wout)
    hstart = ph_idx * SH - PH
    wstart = pw_idx * SW - PW
    hend = np.minimum(hstart + KH, H + PH)
    wend = np.minimum(wstart + KW, W + PW)
    hs_c = np.maximum(hstart, 0)
    ws_c = np.maximum(wstart, 0)
    he_c = np.minimum(hend, H)
    we_c = np.minimum(wend, W)
    hc = hs_c + (he_c - hs_c) // 2
    wc = ws_c + (we_c - ws_c) // 2
    d_center = d[:, hc][:, :, wc]                                   # (N, Hout, Wout)
    inv_pool = (1.0 / ((hend - hstart)[:, None]
                       * (wend - wstart)[None, :])).astype(np.float32)

    # pre-shift the channel-independent centre-depth / 1/pool_size maps into the
    # phase frame: class qw lives at lanes [qw, qw + Wout), zeros elsewhere.
    dc_shift = jnp.zeros((N, NQW, Hout, Wq), jnp.float32)
    invp_np = np.zeros((NQW, Hout, Wq), np.float32)
    for q in range(NQW):
        dc_shift = dc_shift.at[:, q, :, q:q + Wout].set(d_center)
        invp_np[q, :, q:q + Wout] = inv_pool
    invp_shift = jnp.asarray(invp_np)

    kernel = _make_kernel(KH, KW, SH, SW, Hout, Wout, NQW)

    out = pl.pallas_call(
        kernel,
        out_shape=jax.ShapeDtypeStruct((N, Cp, Hout, Wout), x_nchw.dtype),
        grid=(N, CO, CI),
        in_specs=[
            pl.BlockSpec((None, SH, SW, tc, Hq, Wq),
                         lambda n, co, ci: (n, 0, 0, co * CI + ci, 0, 0)),
            pl.BlockSpec((None, SH, SW, Hq, Wq),
                         lambda n, co, ci: (n, 0, 0, 0, 0)),
            pl.BlockSpec((None, NQW, Hout, Wq),
                         lambda n, co, ci: (n, 0, 0, 0)),
            pl.BlockSpec((NQW, Hout, Wq),
                         lambda n, co, ci: (0, 0, 0)),
        ],
        out_specs=pl.BlockSpec((None, tc, Hout, Wout),
                               lambda n, co, ci: (n, co * CI + ci, 0, 0)),
        scratch_shapes=[pltpu.VMEM((KH, KW, Hout, Wq), jnp.float32)],
        compiler_params=pltpu.CompilerParams(
            dimension_semantics=("parallel", "parallel", "arbitrary"),
            vmem_limit_bytes=vmem_limit,
        ),
    )(x_ph, d_ph, dc_shift, invp_shift)

    return out[:, :C] if Cp > C else out


class DepthAvgPooling:
    """JAX/Pallas analogue of the PyTorch DepthAvgPooling module (forward only)."""
    # TODO(synk): ctx.depth_weight_count (backward-only bookkeeping buffer) is not produced.

    def __init__(self, kernel_size, stride=1, padding=0):
        self.kernel_size = kernel_size
        self.stride = stride
        self.padding = padding

    def __call__(self, input_nchw, depth_n1hw):
        return depth_avg_pooling(input_nchw, depth_n1hw,
                                 self.kernel_size, self.stride, self.padding)


def _reference(x, depth, kernel_size, stride, padding):
    """Pure numpy re-implementation of the CUDA forward for verification."""
    x = np.asarray(x, np.float64)
    depth = np.asarray(depth, np.float64)
    KH, KW = _pair(kernel_size)
    SH, SW = _pair(stride)
    PH, PW = _pair(padding)
    N, C, H, W = x.shape
    Hout = (H + 2 * PH - KH) // SH + 1
    Wout = (W + 2 * PW - KW) // SW + 1
    out = np.zeros((N, C, Hout, Wout), np.float64)
    for n in range(N):
        for ph in range(Hout):
            for pw in range(Wout):
                hstart = ph * SH - PH
                wstart = pw * SW - PW
                hend = min(hstart + KH, H + PH)
                wend = min(wstart + KW, W + PW)
                pool_size = (hend - hstart) * (wend - wstart)
                hs, ws = max(hstart, 0), max(wstart, 0)
                he, we = min(hend, H), min(wend, W)
                dc = depth[n, 0, hs + (he - hs) // 2, ws + (we - ws) // 2]
                w8 = np.exp(-np.abs(dc - depth[n, 0, hs:he, ws:we]))
                for c in range(C):
                    out[n, c, ph, pw] = np.sum(x[n, c, hs:he, ws:we] * w8) / pool_size
    return out


if __name__ == "__main__":
    key = jax.random.PRNGKey(0)
    kx, kd = jax.random.split(key)

    def run_case(N, C, H, W, ks, st, pd, **kw):
        x = jax.random.normal(kx, (N, C, H, W), dtype=jnp.float32)
        depth = jax.random.uniform(kd, (N, 1, H, W), dtype=jnp.float32,
                                   minval=0.5, maxval=5.0)
        out = jax.block_until_ready(depth_avg_pooling(x, depth, ks, st, pd, **kw))
        ref = _reference(np.asarray(x), np.asarray(depth), ks, st, pd)
        np.testing.assert_allclose(np.asarray(out), ref, rtol=1e-4, atol=1e-5)
        return out

    # stride-2 / padded case (phase deinterleave + window clipping), module-style call
    pool = DepthAvgPooling(kernel_size=3, stride=2, padding=1)
    x0 = jax.random.normal(kx, (2, 4, 16, 16), dtype=jnp.float32)
    d0 = jax.random.uniform(kd, (2, 1, 16, 16), dtype=jnp.float32, minval=0.5, maxval=5.0)
    out0 = jax.block_until_ready(pool(x0, d0))
    np.testing.assert_allclose(np.asarray(out0),
                               _reference(np.asarray(x0), np.asarray(d0), 3, 2, 1),
                               rtol=1e-4, atol=1e-5)
    assert out0.shape == (2, 4, 8, 8) and out0.dtype == jnp.float32

    # stride-1 / unpadded case (reshape-only fast path)
    out1 = run_case(2, 4, 16, 16, 3, 1, 0)
    assert out1.shape == (2, 4, 14, 14)

    # N == 1 with a forced small channel tile: exercises channel padding,
    # the parallel c_outer split, and reuse of the hoisted weight scratch.
    out2 = run_case(1, 7, 16, 16, 3, 2, 1, max_channels_per_tile=2)
    assert out2.shape == (1, 7, 8, 8)

    # multi-tile channel axis with an exact divisor (no padding path)
    out3 = run_case(2, 6, 16, 16, 3, 1, 0, max_channels_per_tile=4)
    assert out3.shape == (2, 6, 14, 14)

    print("KERNEL_OK")
</pallas_src>

<mosaic_0001>
module attributes {stable_mosaic.version = 11 : i64} {
  func.func @kernel(%arg0: i32, %arg1: i32, %arg2: i32, %arg3: memref<1x2x2x4x9x9xf32, #tpu.memory_space<vmem>>, %arg4: memref<1x2x2x9x9xf32, #tpu.memory_space<vmem>>, %arg5: memref<1x2x8x9xf32, #tpu.memory_space<vmem>>, %arg6: memref<2x8x9xf32, #tpu.memory_space<vmem>>, %arg7: memref<1x4x8x8xf32, #tpu.memory_space<vmem>>, %arg8: memref<3x3x8x9xf32, #tpu.memory_space<vmem>>) attributes {dimension_semantics = [#tpu.dimension_semantics<parallel>, #tpu.dimension_semantics<parallel>, #tpu.dimension_semantics<arbitrary>], iteration_bounds = array<i64: 2, 1, 1>, scalar_prefetch = 0 : i64, scratch_operands = 1 : i64, tpu.core_type = #tpu.core_type<tc>, window_params = [{transform_indices = @transform_0, window_bounds = array<i64: 1, 2, 2, 4, 9, 9>}, {transform_indices = @transform_1, window_bounds = array<i64: 1, 2, 2, 9, 9>}, {transform_indices = @transform_2, window_bounds = array<i64: 1, 2, 8, 9>}, {pipeline_mode = #tpu.pipeline_mode<synchronous>, transform_indices = @transform_3, window_bounds = array<i64: 2, 8, 9>}, {transform_indices = @transform_4, window_bounds = array<i64: 1, 4, 8, 8>}]} {
    %c0_i32 = arith.constant 0 : i32
    %0 = arith.cmpi eq, %arg2, %c0_i32 : i32
    %1 = arith.extui %0 : i1 to i32
    %c0_i32_0 = arith.constant 0 : i32
    %2 = arith.cmpi ne, %1, %c0_i32_0 : i32
    scf.if %2 {
      %c0_75 = arith.constant 0 : index
      %c0_76 = arith.constant 0 : index
      %c0_77 = arith.constant 0 : index
      %c0_78 = arith.constant 0 : index
      %c0_79 = arith.constant 0 : index
      %77 = vector.load %arg4[%c0_75, %c0_76, %c0_77, %c0_78, %c0_79] : memref<1x2x2x9x9xf32, #tpu.memory_space<vmem>>, vector<1x1x1x8x9xf32>
      %78 = vector.shape_cast %77 : vector<1x1x1x8x9xf32> to vector<8x9xf32>
      %c0_80 = arith.constant 0 : index
      %c0_81 = arith.constant 0 : index
      %c0_82 = arith.constant 0 : index
      %c0_83 = arith.constant 0 : index
      %79 = vector.load %arg5[%c0_80, %c0_81, %c0_82, %c0_83] : memref<1x2x8x9xf32, #tpu.memory_space<vmem>>, vector<1x1x8x9xf32>
      %80 = vector.shape_cast %79 : vector<1x1x8x9xf32> to vector<8x9xf32>
      %81 = arith.subf %80, %78 : vector<8x9xf32>
      %82 = math.absf %81 : vector<8x9xf32>
      %cst_84 = arith.constant 0.000000e+00 : f32
      %83 = vector.broadcast %cst_84 : f32 to vector<8x9xf32>
      %84 = arith.subf %83, %82 : vector<8x9xf32>
      %85 = math.exp %84 : vector<8x9xf32>
      %c0_85 = arith.constant 0 : index
      %c0_86 = arith.constant 0 : index
      %c0_87 = arith.constant 0 : index
      %86 = vector.load %arg6[%c0_85, %c0_86, %c0_87] : memref<2x8x9xf32, #tpu.memory_space<vmem>>, vector<1x8x9xf32>
      %87 = vector.shape_cast %86 : vector<1x8x9xf32> to vector<8x9xf32>
      %88 = arith.mulf %85, %87 : vector<8x9xf32>
      %c0_88 = arith.constant 0 : index
      %c0_89 = arith.constant 0 : index
      %c0_90 = arith.constant 0 : index
      %c0_91 = arith.constant 0 : index
      %89 = vector.load %arg8[%c0_88, %c0_89, %c0_90, %c0_91] : memref<3x3x8x9xf32, #tpu.memory_space<vmem>>, vector<1x1x8x9xf32>
      %90 = vector.shape_cast %89 : vector<1x1x8x9xf32> to vector<8x9xf32>
      %91 = vector.shape_cast %88 : vector<8x9xf32> to vector<1x1x8x9xf32>
      tpu.vector_store %arg8[%c0_88, %c0_89, %c0_90, %c0_91], %91 {strides = array<i32>} : memref<3x3x8x9xf32, #tpu.memory_space<vmem>>, vector<1x1x8x9xf32>,
      %c0_92 = arith.constant 0 : index
      %c0_93 = arith.constant 0 : index
      %c1_94 = arith.constant 1 : index
      %c0_95 = arith.constant 0 : index
      %c0_96 = arith.constant 0 : index
      %92 = vector.load %arg4[%c0_92, %c0_93, %c1_94, %c0_95, %c0_96] : memref<1x2x2x9x9xf32, #tpu.memory_space<vmem>>, vector<1x1x1x8x9xf32>
      %93 = vector.shape_cast %92 : vector<1x1x1x8x9xf32> to vector<8x9xf32>
      %c0_97 = arith.constant 0 : index
      %c0_98 = arith.constant 0 : index
      %c0_99 = arith.constant 0 : index
      %c0_100 = arith.constant 0 : index
      %94 = vector.load %arg5[%c0_97, %c0_98, %c0_99, %c0_100] : memref<1x2x8x9xf32, #tpu.memory_space<vmem>>, vector<1x1x8x9xf32>
      %95 = vector.shape_cast %94 : vector<1x1x8x9xf32> to vector<8x9xf32>
      %96 = arith.subf %95, %93 : vector<8x9xf32>
      %97 = math.absf %96 : vector<8x9xf32>
      %cst_101 = arith.constant 0.000000e+00 : f32
      %98 = vector.broadcast %cst_101 : f32 to vector<8x9xf32>
      %99 = arith.subf %98, %97 : vector<8x9xf32>
      %100 = math.exp %99 : vector<8x9xf32>
      %c0_102 = arith.constant 0 : index
      %c0_103 = arith.constant 0 : index
      %c0_104 = arith.constant 0 : index
      %101 = vector.load %arg6[%c0_102, %c0_103, %c0_104] : memref<2x8x9xf32, #tpu.memory_space<vmem>>, vector<1x8x9xf32>
      %102 = vector.shape_cast %101 : vector<1x8x9xf32> to vector<8x9xf32>
      %103 = arith.mulf %100, %102 : vector<8x9xf32>
      %c0_105 = arith.constant 0 : index
      %c1_106 = arith.constant 1 : index
      %c0_107 = arith.constant 0 : index
      %c0_108 = arith.constant 0 : index
      %104 = vector.load %arg8[%c0_105, %c1_106, %c0_107, %c0_108] : memref<3x3x8x9xf32, #tpu.memory_space<vmem>>, vector<1x1x8x9xf32>
      %105 = vector.shape_cast %104 : vector<1x1x8x9xf32> to vector<8x9xf32>
      %106 = vector.shape_cast %103 : vector<8x9xf32> to vector<1x1x8x9xf32>
      tpu.vector_store %arg8[%c0_105, %c1_106, %c0_107, %c0_108], %106 {strides = array<i32>} : memref<3x3x8x9xf32, #tpu.memory_space<vmem>>, vector<1x1x8x9xf32>,
      %c0_109 = arith.constant 0 : index
      %c0_110 = arith.constant 0 : index
      %c0_111 = arith.constant 0 : index
      %c0_112 = arith.constant 0 : index
      %c0_113 = arith.constant 0 : index
      %107 = vector.load %arg4[%c0_109, %c0_110, %c0_111, %c0_112, %c0_113] : memref<1x2x2x9x9xf32, #tpu.memory_space<vmem>>, vector<1x1x1x8x9xf32>
      %108 = vector.shape_cast %107 : vector<1x1x1x8x9xf32> to vector<8x9xf32>
      %c0_114 = arith.constant 0 : index
      %c1_115 = arith.constant 1 : index
      %c0_116 = arith.constant 0 : index
      %c0_117 = arith.constant 0 : index
      %109 = vector.load %arg5[%c0_114, %c1_115, %c0_116, %c0_117] : memref<1x2x8x9xf32, #tpu.memory_space<vmem>>, vector<1x1x8x9xf32>
      %110 = vector.shape_cast %109 : vector<1x1x8x9xf32> to vector<8x9xf32>
      %111 = arith.subf %110, %108 : vector<8x9xf32>
      %112 = math.absf %111 : vector<8x9xf32>
      %cst_118 = arith.constant 0.000000e+00 : f32
      %113 = vector.broadcast %cst_118 : f32 to vector<8x9xf32>
      %114 = arith.subf %113, %112 : vector<8x9xf32>
      %115 = math.exp %114 : vector<8x9xf32>
      %c1_119 = arith.constant 1 : index
      %c0_120 = arith.constant 0 : index
      %c0_121 = arith.constant 0 : index
      %116 = vector.load %arg6[%c1_119, %c0_120, %c0_121] : memref<2x8x9xf32, #tpu.memory_space<vmem>>, vector<1x8x9xf32>
      %117 = vector.shape_cast %116 : vector<1x8x9xf32> to vector<8x9xf32>
      %118 = arith.mulf %115, %117 : vector<8x9xf32>
      %c0_122 = arith.constant 0 : index
      %c2_123 = arith.constant 2 : index
      %c0_124 = arith.constant 0 : index
      %c0_125 = arith.constant 0 : index
      %119 = vector.load %arg8[%c0_122, %c2_123, %c0_124, %c0_125] : memref<3x3x8x9xf32, #tpu.memory_space<vmem>>, vector<1x1x8x9xf32>
      %120 = vector.shape_cast %119 : vector<1x1x8x9xf32> to vector<8x9xf32>
      %121 = vector.shape_cast %118 : vector<8x9xf32> to vector<1x1x8x9xf32>
      tpu.vector_store %arg8[%c0_122, %c2_123, %c0_124, %c0_125], %121 {strides = array<i32>} : memref<3x3x8x9xf32, #tpu.memory_space<vmem>>, vector<1x1x8x9xf32>,
      %c0_126 = arith.constant 0 : index
      %c1_127 = arith.constant 1 : index
      %c0_128 = arith.constant 0 : index
      %c0_129 = arith.constant 0 : index
      %c0_130 = arith.constant 0 : index
      %122 = vector.load %arg4[%c0_126, %c1_127, %c0_128, %c0_129, %c0_130] : memref<1x2x2x9x9xf32, #tpu.memory_space<vmem>>, vector<1x1x1x8x9xf32>
      %123 = vector.shape_cast %122 : vector<1x1x1x8x9xf32> to vector<8x9xf32>
      %c0_131 = arith.constant 0 : index
      %c0_132 = arith.constant 0 : index
      %c0_133 = arith.constant 0 : index
      %c0_134 = arith.constant 0 : index
      %124 = vector.load %arg5[%c0_131, %c0_132, %c0_133, %c0_134] : memref<1x2x8x9xf32, #tpu.memory_space<vmem>>, vector<1x1x8x9xf32>
      %125 = vector.shape_cast %124 : vector<1x1x8x9xf32> to vector<8x9xf32>
      %126 = arith.subf %125, %123 : vector<8x9xf32>
      %127 = math.absf %126 : vector<8x9xf32>
      %cst_135 = arith.constant 0.000000e+00 : f32
      %128 = vector.broadcast %cst_135 : f32 to vector<8x9xf32>
      %129 = arith.subf %128, %127 : vector<8x9xf32>
      %130 = math.exp %129 : vector<8x9xf32>
      %c0_136 = arith.constant 0 : index
      %c0_137 = arith.constant 0 : index
      %c0_138 = arith.constant 0 : index
      %131 = vector.load %arg6[%c0_136, %c0_137, %c0_138] : memref<2x8x9xf32, #tpu.memory_space<vmem>>, vector<1x8x9xf32>
      %132 = vector.shape_cast %131 : vector<1x8x9xf32> to vector<8x9xf32>
      %133 = arith.mulf %130, %132 : vector<8x9xf32>
      %c1_139 = arith.constant 1 : index
      %c0_140 = arith.constant 0 : index
      %c0_141 = arith.constant 0 : index
      %c0_142 = arith.constant 0 : index
      %134 = vector.load %arg8[%c1_139, %c0_140, %c0_141, %c0_142] : memref<3x3x8x9xf32, #tpu.memory_space<vmem>>, vector<1x1x8x9xf32>
      %135 = vector.shape_cast %134 : vector<1x1x8x9xf32> to vector<8x9xf32>
      %136 = vector.shape_cast %133 : vector<8x9xf32> to vector<1x1x8x9xf32>
      tpu.vector_store %arg8[%c1_139, %c0_140, %c0_141, %c0_142], %136 {strides = array<i32>} : memref<3x3x8x9xf32, #tpu.memory_space<vmem>>, vector<1x1x8x9xf32>,
      %c0_143 = arith.constant 0 : index
      %c1_144 = arith.constant 1 : index
      %c1_145 = arith.constant 1 : index
      %c0_146 = arith.constant 0 : index
      %c0_147 = arith.constant 0 : index
      %137 = vector.load %arg4[%c0_143, %c1_144, %c1_145, %c0_146, %c0_147] : memref<1x2x2x9x9xf32, #tpu.memory_space<vmem>>, vector<1x1x1x8x9xf32>
      %138 = vector.shape_cast %137 : vector<1x1x1x8x9xf32> to vector<8x9xf32>
      %c0_148 = arith.constant 0 : index
      %c0_149 = arith.constant 0 : index
      %c0_150 = arith.constant 0 : index
      %c0_151 = arith.constant 0 : index
      %139 = vector.load %arg5[%c0_148, %c0_149, %c0_150, %c0_151] : memref<1x2x8x9xf32, #tpu.memory_space<vmem>>, vector<1x1x8x9xf32>
      %140 = vector.shape_cast %139 : vector<1x1x8x9xf32> to vector<8x9xf32>
      %141 = arith.subf %140, %138 : vector<8x9xf32>
      %142 = math.absf %141 : vector<8x9xf32>
      %cst_152 = arith.constant 0.000000e+00 : f32
      %143 = vector.broadcast %cst_152 : f32 to vector<8x9xf32>
      %144 = arith.subf %143, %142 : vector<8x9xf32>
      %145 = math.exp %144 : vector<8x9xf32>
      %c0_153 = arith.constant 0 : index
      %c0_154 = arith.constant 0 : index
      %c0_155 = arith.constant 0 : index
      %146 = vector.load %arg6[%c0_153, %c0_154, %c0_155] : memref<2x8x9xf32, #tpu.memory_space<vmem>>, vector<1x8x9xf32>
      %147 = vector.shape_cast %146 : vector<1x8x9xf32> to vector<8x9xf32>
      %148 = arith.mulf %145, %147 : vector<8x9xf32>
      %c1_156 = arith.constant 1 : index
      %c1_157 = arith.constant 1 : index
      %c0_158 = arith.constant 0 : index
      %c0_159 = arith.constant 0 : index
      %149 = vector.load %arg8[%c1_156, %c1_157, %c0_158, %c0_159] : memref<3x3x8x9xf32, #tpu.memory_space<vmem>>, vector<1x1x8x9xf32>
      %150 = vector.shape_cast %149 : vector<1x1x8x9xf32> to vector<8x9xf32>
      %151 = vector.shape_cast %148 : vector<8x9xf32> to vector<1x1x8x9xf32>
      tpu.vector_store %arg8[%c1_156, %c1_157, %c0_158, %c0_159], %151 {strides = array<i32>} : memref<3x3x8x9xf32, #tpu.memory_space<vmem>>, vector<1x1x8x9xf32>,
      %c0_160 = arith.constant 0 : index
      %c1_161 = arith.constant 1 : index
      %c0_162 = arith.constant 0 : index
      %c0_163 = arith.constant 0 : index
      %c0_164 = arith.constant 0 : index
      %152 = vector.load %arg4[%c0_160, %c1_161, %c0_162, %c0_163, %c0_164] : memref<1x2x2x9x9xf32, #tpu.memory_space<vmem>>, vector<1x1x1x8x9xf32>
      %153 = vector.shape_cast %152 : vector<1x1x1x8x9xf32> to vector<8x9xf32>
      %c0_165 = arith.constant 0 : index
      %c1_166 = arith.constant 1 : index
      %c0_167 = arith.constant 0 : index
      %c0_168 = arith.constant 0 : index
      %154 = vector.load %arg5[%c0_165, %c1_166, %c0_167, %c0_168] : memref<1x2x8x9xf32, #tpu.memory_space<vmem>>, vector<1x1x8x9xf32>
      %155 = vector.shape_cast %154 : vector<1x1x8x9xf32> to vector<8x9xf32>
      %156 = arith.subf %155, %153 : vector<8x9xf32>
      %157 = math.absf %156 : vector<8x9xf32>
      %cst_169 = arith.constant 0.000000e+00 : f32
      %158 = vector.broadcast %cst_169 : f32 to vector<8x9xf32>
      %159 = arith.subf %158, %157 : vector<8x9xf32>
      %160 = math.exp %159 : vector<8x9xf32>
      %c1_170 = arith.constant 1 : index
      %c0_171 = arith.constant 0 : index
      %c0_172 = arith.constant 0 : index
      %161 = vector.load %arg6[%c1_170, %c0_171, %c0_172] : memref<2x8x9xf32, #tpu.memory_space<vmem>>, vector<1x8x9xf32>
      %162 = vector.shape_cast %161 : vector<1x8x9xf32> to vector<8x9xf32>
      %163 = arith.mulf %160, %162 : vector<8x9xf32>
      %c1_173 = arith.constant 1 : index
      %c2_174 = arith.constant 2 : index
      %c0_175 = arith.constant 0 : index
      %c0_176 = arith.constant 0 : index
      %164 = vector.load %arg8[%c1_173, %c2_174, %c0_175, %c0_176] : memref<3x3x8x9xf32, #tpu.memory_space<vmem>>, vector<1x1x8x9xf32>
      %165 = vector.shape_cast %164 : vector<1x1x8x9xf32> to vector<8x9xf32>
      %166 = vector.shape_cast %163 : vector<8x9xf32> to vector<1x1x8x9xf32>
      tpu.vector_store %arg8[%c1_173, %c2_174, %c0_175, %c0_176], %166 {strides = array<i32>} : memref<3x3x8x9xf32, #tpu.memory_space<vmem>>, vector<1x1x8x9xf32>,
      %c0_177 = arith.constant 0 : index
      %c0_178 = arith.constant 0 : index
      %c0_179 = arith.constant 0 : index
      %c1_180 = arith.constant 1 : index
      %c0_181 = arith.constant 0 : index
      %167 = vector.load %arg4[%c0_177, %c0_178, %c0_179, %c1_180, %c0_181] : memref<1x2x2x9x9xf32, #tpu.memory_space<vmem>>, vector<1x1x1x8x9xf32>
      %168 = vector.shape_cast %167 : vector<1x1x1x8x9xf32> to vector<8x9xf32>
      %c0_182 = arith.constant 0 : index
      %c0_183 = arith.constant 0 : index
      %c0_184 = arith.constant 0 : index
      %c0_185 = arith.constant 0 : index
      %169 = vector.load %arg5[%c0_182, %c0_183, %c0_184, %c0_185] : memref<1x2x8x9xf32, #tpu.memory_space<vmem>>, vector<1x1x8x9xf32>
      %170 = vector.shape_cast %169 : vector<1x1x8x9xf32> to vector<8x9xf32>
      %171 = arith.subf %170, %168 : vector<8x9xf32>
      %172 = math.absf %171 : vector<8x9xf32>
      %cst_186 = arith.constant 0.000000e+00 : f32
      %173 = vector.broadcast %cst_186 : f32 to vector<8x9xf32>
      %174 = arith.subf %173, %172 : vector<8x9xf32>
      %175 = math.exp %174 : vector<8x9xf32>
      %c0_187 = arith.constant 0 : index
      %c0_188 = arith.constant 0 : index
      %c0_189 = arith.constant 0 : index
      %176 = vector.load %arg6[%c0_187, %c0_188, %c0_189] : memref<2x8x9xf32, #tpu.memory_space<vmem>>, vector<1x8x9xf32>
      %177 = vector.shape_cast %176 : vector<1x8x9xf32> to vector<8x9xf32>
      %178 = arith.mulf %175, %177 : vector<8x9xf32>
      %c2_190 = arith.constant 2 : index
      %c0_191 = arith.constant 0 : index
      %c0_192 = arith.constant 0 : index
      %c0_193 = arith.constant 0 : index
      %179 = vector.load %arg8[%c2_190, %c0_191, %c0_192, %c0_193] : memref<3x3x8x9xf32, #tpu.memory_space<vmem>>, vector<1x1x8x9xf32>
      %180 = vector.shape_cast %179 : vector<1x1x8x9xf32> to vector<8x9xf32>
      %181 = vector.shape_cast %178 : vector<8x9xf32> to vector<1x1x8x9xf32>
      tpu.vector_store %arg8[%c2_190, %c0_191, %c0_192, %c0_193], %181 {strides = array<i32>} : memref<3x3x8x9xf32, #tpu.memory_space<vmem>>, vector<1x1x8x9xf32>,
      %c0_194 = arith.constant 0 : index
      %c0_195 = arith.constant 0 : index
      %c1_196 = arith.constant 1 : index
      %c1_197 = arith.constant 1 : index
      %c0_198 = arith.constant 0 : index
      %182 = vector.load %arg4[%c0_194, %c0_195, %c1_196, %c1_197, %c0_198] : memref<1x2x2x9x9xf32, #tpu.memory_space<vmem>>, vector<1x1x1x8x9xf32>
      %183 = vector.shape_cast %182 : vector<1x1x1x8x9xf32> to vector<8x9xf32>
      %c0_199 = arith.constant 0 : index
      %c0_200 = arith.constant 0 : index
      %c0_201 = arith.constant 0 : index
      %c0_202 = arith.constant 0 : index
      %184 = vector.load %arg5[%c0_199, %c0_200, %c0_201, %c0_202] : memref<1x2x8x9xf32, #tpu.memory_space<vmem>>, vector<1x1x8x9xf32>
      %185 = vector.shape_cast %184 : vector<1x1x8x9xf32> to vector<8x9xf32>
      %186 = arith.subf %185, %183 : vector<8x9xf32>
      %187 = math.absf %186 : vector<8x9xf32>
      %cst_203 = arith.constant 0.000000e+00 : f32
      %188 = vector.broadcast %cst_203 : f32 to vector<8x9xf32>
      %189 = arith.subf %188, %187 : vector<8x9xf32>
      %190 = math.exp %189 : vector<8x9xf32>
      %c0_204 = arith.constant 0 : index
      %c0_205 = arith.constant 0 : index
      %c0_206 = arith.constant 0 : index
      %191 = vector.load %arg6[%c0_204, %c0_205, %c0_206] : memref<2x8x9xf32, #tpu.memory_space<vmem>>, vector<1x8x9xf32>
      %192 = vector.shape_cast %191 : vector<1x8x9xf32> to vector<8x9xf32>
      %193 = arith.mulf %190, %192 : vector<8x9xf32>
      %c2_207 = arith.constant 2 : index
      %c1_208 = arith.constant 1 : index
      %c0_209 = arith.constant 0 : index
      %c0_210 = arith.constant 0 : index
      %194 = vector.load %arg8[%c2_207, %c1_208, %c0_209, %c0_210] : memref<3x3x8x9xf32, #tpu.memory_space<vmem>>, vector<1x1x8x9xf32>
      %195 = vector.shape_cast %194 : vector<1x1x8x9xf32> to vector<8x9xf32>
      %196 = vector.shape_cast %193 : vector<8x9xf32> to vector<1x1x8x9xf32>
      tpu.vector_store %arg8[%c2_207, %c1_208, %c0_209, %c0_210], %196 {strides = array<i32>} : memref<3x3x8x9xf32, #tpu.memory_space<vmem>>, vector<1x1x8x9xf32>,
      %c0_211 = arith.constant 0 : index
      %c0_212 = arith.constant 0 : index
      %c0_213 = arith.constant 0 : index
      %c1_214 = arith.constant 1 : index
      %c0_215 = arith.constant 0 : index
      %197 = vector.load %arg4[%c0_211, %c0_212, %c0_213, %c1_214, %c0_215] : memref<1x2x2x9x9xf32, #tpu.memory_space<vmem>>, vector<1x1x1x8x9xf32>
      %198 = vector.shape_cast %197 : vector<1x1x1x8x9xf32> to vector<8x9xf32>
      %c0_216 = arith.constant 0 : index
      %c1_217 = arith.constant 1 : index
      %c0_218 = arith.constant 0 : index
      %c0_219 = arith.constant 0 : index
      %199 = vector.load %arg5[%c0_216, %c1_217, %c0_218, %c0_219] : memref<1x2x8x9xf32, #tpu.memory_space<vmem>>, vector<1x1x8x9xf32>
      %200 = vector.shape_cast %199 : vector<1x1x8x9xf32> to vector<8x9xf32>
      %201 = arith.subf %200, %198 : vector<8x9xf32>
      %202 = math.absf %201 : vector<8x9xf32>
      %cst_220 = arith.constant 0.000000e+00 : f32
      %203 = vector.broadcast %cst_220 : f32 to vector<8x9xf32>
      %204 = arith.subf %203, %202 : vector<8x9xf32>
      %205 = math.exp %204 : vector<8x9xf32>
      %c1_221 = arith.constant 1 : index
      %c0_222 = arith.constant 0 : index
      %c0_223 = arith.constant 0 : index
      %206 = vector.load %arg6[%c1_221, %c0_222, %c0_223] : memref<2x8x9xf32, #tpu.memory_space<vmem>>, vector<1x8x9xf32>
      %207 = vector.shape_cast %206 : vector<1x8x9xf32> to vector<8x9xf32>
      %208 = arith.mulf %205, %207 : vector<8x9xf32>
      %c2_224 = arith.constant 2 : index
      %c2_225 = arith.constant 2 : index
      %c0_226 = arith.constant 0 : index
      %c0_227 = arith.constant 0 : index
      %209 = vector.load %arg8[%c2_224, %c2_225, %c0_226, %c0_227] : memref<3x3x8x9xf32, #tpu.memory_space<vmem>>, vector<1x1x8x9xf32>
      %210 = vector.shape_cast %209 : vector<1x1x8x9xf32> to vector<8x9xf32>
      %211 = vector.shape_cast %208 : vector<8x9xf32> to vector<1x1x8x9xf32>
      tpu.vector_store %arg8[%c2_224, %c2_225, %c0_226, %c0_227], %211 {strides = array<i32>} : memref<3x3x8x9xf32, #tpu.memory_space<vmem>>, vector<1x1x8x9xf32>,
    } else {
    }
    %cst = arith.constant 0.000000e+00 : f32
    %3 = vector.broadcast %cst : f32 to vector<4x8x9xf32>
    %cst_1 = arith.constant 0.000000e+00 : f32
    %4 = vector.broadcast %cst_1 : f32 to vector<4x8x9xf32>
    %c0 = arith.constant 0 : index
    %c0_2 = arith.constant 0 : index
    %c0_3 = arith.constant 0 : index
    %c0_4 = arith.constant 0 : index
    %c0_5 = arith.constant 0 : index
    %c0_6 = arith.constant 0 : index
    %5 = vector.load %arg3[%c0, %c0_2, %c0_3, %c0_4, %c0_5, %c0_6] : memref<1x2x2x4x9x9xf32, #tpu.memory_space<vmem>>, vector<1x1x1x4x8x9xf32>
    %6 = vector.shape_cast %5 : vector<1x1x1x4x8x9xf32> to vector<4x8x9xf32>
    %c0_7 = arith.constant 0 : index
    %c0_8 = arith.constant 0 : index
    %c0_9 = arith.constant 0 : index
    %c0_10 = arith.constant 0 : index
    %7 = vector.load %arg8[%c0_7, %c0_8, %c0_9, %c0_10] : memref<3x3x8x9xf32, #tpu.memory_space<vmem>>, vector<1x1x8x9xf32>
    %8 = vector.shape_cast %7 : vector<1x1x8x9xf32> to vector<8x9xf32>
    %9 = vector.shape_cast %8 : vector<8x9xf32> to vector<1x8x9xf32>
    %10 = vector.broadcast %9 : vector<1x8x9xf32> to vector<4x8x9xf32>
    %11 = arith.mulf %6, %10 : vector<4x8x9xf32>
    %12 = arith.addf %3, %11 : vector<4x8x9xf32>
    %c0_11 = arith.constant 0 : index
    %c2 = arith.constant 2 : index
    %c0_12 = arith.constant 0 : index
    %c0_13 = arith.constant 0 : index
    %13 = vector.load %arg8[%c0_11, %c2, %c0_12, %c0_13] : memref<3x3x8x9xf32, #tpu.memory_space<vmem>>, vector<1x1x8x9xf32>
    %14 = vector.shape_cast %13 : vector<1x1x8x9xf32> to vector<8x9xf32>
    %15 = vector.shape_cast %14 : vector<8x9xf32> to vector<1x8x9xf32>
    %16 = vector.broadcast %15 : vector<1x8x9xf32> to vector<4x8x9xf32>
    %17 = arith.mulf %6, %16 : vector<4x8x9xf32>
    %18 = arith.addf %4, %17 : vector<4x8x9xf32>
    %c0_14 = arith.constant 0 : index
    %c0_15 = arith.constant 0 : index
    %c1 = arith.constant 1 : index
    %c0_16 = arith.constant 0 : index
    %c0_17 = arith.constant 0 : index
    %c0_18 = arith.constant 0 : index
    %19 = vector.load %arg3[%c0_14, %c0_15, %c1, %c0_16, %c0_17, %c0_18] : memref<1x2x2x4x9x9xf32, #tpu.memory_space<vmem>>, vector<1x1x1x4x8x9xf32>
    %20 = vector.shape_cast %19 : vector<1x1x1x4x8x9xf32> to vector<4x8x9xf32>
    %c0_19 = arith.constant 0 : index
    %c1_20 = arith.constant 1 : index
    %c0_21 = arith.constant 0 : index
    %c0_22 = arith.constant 0 : index
    %21 = vector.load %arg8[%c0_19, %c1_20, %c0_21, %c0_22] : memref<3x3x8x9xf32, #tpu.memory_space<vmem>>, vector<1x1x8x9xf32>
    %22 = vector.shape_cast %21 : vector<1x1x8x9xf32> to vector<8x9xf32>
    %23 = vector.shape_cast %22 : vector<8x9xf32> to vector<1x8x9xf32>
    %24 = vector.broadcast %23 : vector<1x8x9xf32> to vector<4x8x9xf32>
    %25 = arith.mulf %20, %24 : vector<4x8x9xf32>
    %26 = arith.addf %12, %25 : vector<4x8x9xf32>
    %c0_23 = arith.constant 0 : index
    %c1_24 = arith.constant 1 : index
    %c0_25 = arith.constant 0 : index
    %c0_26 = arith.constant 0 : index
    %c0_27 = arith.constant 0 : index
    %c0_28 = arith.constant 0 : index
    %27 = vector.load %arg3[%c0_23, %c1_24, %c0_25, %c0_26, %c0_27, %c0_28] : memref<1x2x2x4x9x9xf32, #tpu.memory_space<vmem>>, vector<1x1x1x4x8x9xf32>
    %28 = vector.shape_cast %27 : vector<1x1x1x4x8x9xf32> to vector<4x8x9xf32>
    %c1_29 = arith.constant 1 : index
    %c0_30 = arith.constant 0 : index
    %c0_31 = arith.constant 0 : index
    %c0_32 = arith.constant 0 : index
    %29 = vector.load %arg8[%c1_29, %c0_30, %c0_31, %c0_32] : memref<3x3x8x9xf32, #tpu.memory_space<vmem>>, vector<1x1x8x9xf32>
    %30 = vector.shape_cast %29 : vector<1x1x8x9xf32> to vector<8x9xf32>
    %31 = vector.shape_cast %30 : vector<8x9xf32> to vector<1x8x9xf32>
    %32 = vector.broadcast %31 : vector<1x8x9xf32> to vector<4x8x9xf32>
    %33 = arith.mulf %28, %32 : vector<4x8x9xf32>
    %34 = arith.addf %26, %33 : vector<4x8x9xf32>
    %c1_33 = arith.constant 1 : index
    %c2_34 = arith.constant 2 : index
    %c0_35 = arith.constant 0 : index
    %c0_36 = arith.constant 0 : index
    %35 = vector.load %arg8[%c1_33, %c2_34, %c0_35, %c0_36] : memref<3x3x8x9xf32, #tpu.memory_space<vmem>>, vector<1x1x8x9xf32>
    %36 = vector.shape_cast %35 : vector<1x1x8x9xf32> to vector<8x9xf32>
    %37 = vector.shape_cast %36 : vector<8x9xf32> to vector<1x8x9xf32>
    %38 = vector.broadcast %37 : vector<1x8x9xf32> to vector<4x8x9xf32>
    %39 = arith.mulf %28, %38 : vector<4x8x9xf32>
    %40 = arith.addf %18, %39 : vector<4x8x9xf32>
    %c0_37 = arith.constant 0 : index
    %c1_38 = arith.constant 1 : index
    %c1_39 = arith.constant 1 : index
    %c0_40 = arith.constant 0 : index
    %c0_41 = arith.constant 0 : index
    %c0_42 = arith.constant 0 : index
    %41 = vector.load %arg3[%c0_37, %c1_38, %c1_39, %c0_40, %c0_41, %c0_42] : memref<1x2x2x4x9x9xf32, #tpu.memory_space<vmem>>, vector<1x1x1x4x8x9xf32>
    %42 = vector.shape_cast %41 : vector<1x1x1x4x8x9xf32> to vector<4x8x9xf32>
    %c1_43 = arith.constant 1 : index
    %c1_44 = arith.constant 1 : index
    %c0_45 = arith.constant 0 : index
    %c0_46 = arith.constant 0 : index
    %43 = vector.load %arg8[%c1_43, %c1_44, %c0_45, %c0_46] : memref<3x3x8x9xf32, #tpu.memory_space<vmem>>, vector<1x1x8x9xf32>
    %44 = vector.shape_cast %43 : vector<1x1x8x9xf32> to vector<8x9xf32>
    %45 = vector.shape_cast %44 : vector<8x9xf32> to vector<1x8x9xf32>
    %46 = vector.broadcast %45 : vector<1x8x9xf32> to vector<4x8x9xf32>
    %47 = arith.mulf %42, %46 : vector<4x8x9xf32>
    %48 = arith.addf %34, %47 : vector<4x8x9xf32>
    %c0_47 = arith.constant 0 : index
    %c0_48 = arith.constant 0 : index
    %c0_49 = arith.constant 0 : index
    %c0_50 = arith.constant 0 : index
    %c1_51 = arith.constant 1 : index
    %c0_52 = arith.constant 0 : index
    %49 = vector.load %arg3[%c0_47, %c0_48, %c0_49, %c0_50, %c1_51, %c0_52] : memref<1x2x2x4x9x9xf32, #tpu.memory_space<vmem>>, vector<1x1x1x4x8x9xf32>
    %50 = vector.shape_cast %49 : vector<1x1x1x4x8x9xf32> to vector<4x8x9xf32>
    %c2_53 = arith.constant 2 : index
    %c0_54 = arith.constant 0 : index
    %c0_55 = arith.constant 0 : index
    %c0_56 = arith.constant 0 : index
    %51 = vector.load %arg8[%c2_53, %c0_54, %c0_55, %c0_56] : memref<3x3x8x9xf32, #tpu.memory_space<vmem>>, vector<1x1x8x9xf32>
    %52 = vector.shape_cast %51 : vector<1x1x8x9xf32> to vector<8x9xf32>
    %53 = vector.shape_cast %52 : vector<8x9xf32> to vector<1x8x9xf32>
    %54 = vector.broadcast %53 : vector<1x8x9xf32> to vector<4x8x9xf32>
    %55 = arith.mulf %50, %54 : vector<4x8x9xf32>
    %56 = arith.addf %48, %55 : vector<4x8x9xf32>
    %c2_57 = arith.constant 2 : index
    %c2_58 = arith.constant 2 : index
    %c0_59 = arith.constant 0 : index
    %c0_60 = arith.constant 0 : index
    %57 = vector.load %arg8[%c2_57, %c2_58, %c0_59, %c0_60] : memref<3x3x8x9xf32, #tpu.memory_space<vmem>>, vector<1x1x8x9xf32>
    %58 = vector.shape_cast %57 : vector<1x1x8x9xf32> to vector<8x9xf32>
    %59 = vector.shape_cast %58 : vector<8x9xf32> to vector<1x8x9xf32>
    %60 = vector.broadcast %59 : vector<1x8x9xf32> to vector<4x8x9xf32>
    %61 = arith.mulf %50, %60 : vector<4x8x9xf32>
    %62 = arith.addf %40, %61 : vector<4x8x9xf32>
    %c0_61 = arith.constant 0 : index
    %c0_62 = arith.constant 0 : index
    %c1_63 = arith.constant 1 : index
    %c0_64 = arith.constant 0 : index
    %c1_65 = arith.constant 1 : index
    %c0_66 = arith.constant 0 : index
    %63 = vector.load %arg3[%c0_61, %c0_62, %c1_63, %c0_64, %c1_65, %c0_66] : memref<1x2x2x4x9x9xf32, #tpu.memory_space<vmem>>, vector<1x1x1x4x8x9xf32>
    %64 = vector.shape_cast %63 : vector<1x1x1x4x8x9xf32> to vector<4x8x9xf32>
    %c2_67 = arith.constant 2 : index
    %c1_68 = arith.constant 1 : index
    %c0_69 = arith.constant 0 : index
    %c0_70 = arith.constant 0 : index
    %65 = vector.load %arg8[%c2_67, %c1_68, %c0_69, %c0_70] : memref<3x3x8x9xf32, #tpu.memory_space<vmem>>, vector<1x1x8x9xf32>
    %66 = vector.shape_cast %65 : vector<1x1x8x9xf32> to vector<8x9xf32>
    %67 = vector.shape_cast %66 : vector<8x9xf32> to vector<1x8x9xf32>
    %68 = vector.broadcast %67 : vector<1x8x9xf32> to vector<4x8x9xf32>
    %69 = arith.mulf %64, %68 : vector<4x8x9xf32>
    %70 = arith.addf %56, %69 : vector<4x8x9xf32>
    %71 = vector.extract_strided_slice %70 {offsets = [0, 0, 0], sizes = [4, 8, 8], strides = [1, 1, 1]} : vector<4x8x9xf32> to vector<4x8x8xf32>
    %72 = vector.extract_strided_slice %62 {offsets = [0, 0, 1], sizes = [4, 8, 8], strides = [1, 1, 1]} : vector<4x8x9xf32> to vector<4x8x8xf32>
    %73 = arith.addf %71, %72 : vector<4x8x8xf32>
    %c0_71 = arith.constant 0 : index
    %c0_72 = arith.constant 0 : index
    %c0_73 = arith.constant 0 : index
    %c0_74 = arith.constant 0 : index
    %74 = vector.load %arg7[%c0_71, %c0_72, %c0_73, %c0_74] : memref<1x4x8x8xf32, #tpu.memory_space<vmem>>, vector<1x4x8x8xf32>
    %75 = vector.shape_cast %74 : vector<1x4x8x8xf32> to vector<4x8x8xf32>
    %76 = vector.shape_cast %73 : vector<4x8x8xf32> to vector<1x4x8x8xf32>
    tpu.vector_store %arg7[%c0_71, %c0_72, %c0_73, %c0_74], %76 {strides = array<i32>} : memref<1x4x8x8xf32, #tpu.memory_space<vmem>>, vector<1x4x8x8xf32>,
    return
  }
  func.func @transform_0(%arg0: i32, %arg1: i32, %arg2: i32) -> (i32, i32, i32, i32, i32, i32) {
    %c1_i32 = arith.constant 1 : i32
    %0 = arith.muli %arg1, %c1_i32 : i32
    %1 = arith.addi %0, %arg2 : i32
    %c0_i32 = arith.constant 0 : i32
    %c0_i32_0 = arith.constant 0 : i32
    %c0_i32_1 = arith.constant 0 : i32
    %c0_i32_2 = arith.constant 0 : i32
    %c0_i32_3 = arith.constant 0 : i32
    return %arg0, %c0_i32, %c0_i32_0, %1, %c0_i32_1, %c0_i32_2 : i32, i32, i32, i32, i32, i32
  }
  func.func @transform_1(%arg0: i32, %arg1: i32, %arg2: i32) -> (i32, i32, i32, i32, i32) {
    %c0_i32 = arith.constant 0 : i32
    %c0_i32_0 = arith.constant 0 : i32
    %c0_i32_1 = arith.constant 0 : i32
    %c0_i32_2 = arith.constant 0 : i32
    %c0_i32_3 = arith.constant 0 : i32
    return %arg0, %c0_i32, %c0_i32_0, %c0_i32_1, %c0_i32_2 : i32, i32, i32, i32, i32
  }
  func.func @transform_2(%arg0: i32, %arg1: i32, %arg2: i32) -> (i32, i32, i32, i32) {
    %c0_i32 = arith.constant 0 : i32
    %c0_i32_0 = arith.constant 0 : i32
    %c0_i32_1 = arith.constant 0 : i32
    %c0_i32_2 = arith.constant 0 : i32
    return %arg0, %c0_i32, %c0_i32_0, %c0_i32_1 : i32, i32, i32, i32
  }
  func.func @transform_3(%arg0: i32, %arg1: i32, %arg2: i32) -> (i32, i32, i32) {
    %c0_i32 = arith.constant 0 : i32
    %c0_i32_0 = arith.constant 0 : i32
    %c0_i32_1 = arith.constant 0 : i32
    %c0_i32_2 = arith.constant 0 : i32
    return %c0_i32, %c0_i32_0, %c0_i32_1 : i32, i32, i32
  }
  func.func @transform_4(%arg0: i32, %arg1: i32, %arg2: i32) -> (i32, i32, i32, i32) {
    %c1_i32 = arith.constant 1 : i32
    %0 = arith.muli %arg1, %c1_i32 : i32
    %1 = arith.addi %0, %arg2 : i32
    %c0_i32 = arith.constant 0 : i32
    %c0_i32_0 = arith.constant 0 : i32
    %c0_i32_1 = arith.constant 0 : i32
    return %arg0, %1, %c0_i32, %c0_i32_0 : i32, i32, i32, i32
  }
}

</mosaic_0001>

<llo_original>
// kernel: tpu_custom_call.1
$region0: #{tpu_custom_call.1}
  #allocation0 [shape = 'u32[]', space=smem, size = 0x4, offset = 0x4, fixed_abs, tag = 'smem constant byte address 0x4 - core index']
  #allocation1 [shape = 'u32[144,128]{1,0:T(1,128)}', space=vmem, size = 0x12000, scoped, tag = 'internal scratch']
  #allocation2 [shape = 'f32[3,3,8,9]{3,2,1,0:T(8,128)}', space=vmem, size = 0x9000, scoped, tag = 'scratch operand']
  %s0 = inlined_call_operand.hbm [shape: f32[2,2,2,4,9,9], index: 0, kind: input, shape index: {}]
  %s1 = inlined_call_operand.hbm [shape: f32[2,2,2,9,9], index: 1, kind: input, shape index: {}]
  %s2 = inlined_call_operand.hbm [shape: f32[2,2,8,9], index: 2, kind: input, shape index: {}]
  %s3 = inlined_call_operand.hbm [shape: f32[2,8,9], index: 3, kind: input, shape index: {}]
  %s4 = inlined_call_operand.hbm [shape: f32[2,4,8,8], index: 4, kind: output, shape index: {}]
  %s5 = sld [smem:[#allocation0]]
  $region69: #{tpu_custom_call.1} parent=0
    _
  %s7 = ssub.s32 1, %s5
  %s8 = scalar_select 0, %s7, %s5
  $region1: #{tpu_custom_call.1} parent=0
    #allocation3 [shape = 'u8[262144]{0}', space=vmem, size = 0x40000, scoped, tag = 'input window, operand 0']
    #allocation4 [shape = 's32[2]{0}', space=sflag, size = 0x8, scoped, tag = 'scoped memory for tpu_custom_call.1']
    #allocation5 [shape = 's32[2]{0}', space=sflag, size = 0x8, scoped, tag = 'scoped memory for tpu_custom_call.1']
    #allocation6 [shape = 'u8[65536]{0}', space=vmem, size = 0x10000, scoped, tag = 'input window, operand 1']
    #allocation7 [shape = 's32[2]{0}', space=sflag, size = 0x8, scoped, tag = 'scoped memory for tpu_custom_call.1']
    #allocation8 [shape = 'u8[16384]{0}', space=vmem, size = 0x4000, scoped, tag = 'input window, operand 2']
    #allocation9 [shape = 'u8[8192]{0}', space=vmem, size = 0x2000, scoped, tag = 'input window, operand 3, single buffered']
    #allocation10 [shape = 's32[1]{0}', space=sflag, size = 0x4, scoped, tag = 'scoped memory for tpu_custom_call.1']
    #allocation11 [shape = 'u8[32768]{0}', space=vmem, size = 0x8000, scoped, tag = 'output window, operand 0']
    %9 = vsyncpa [#allocation4], 0
    %s10 = scalar_lea.sflag [#allocation4], 1
    %11 = vsyncpa %s10, 0
    %12 = vsyncpa [#allocation7], 0
    %s13 = scalar_lea.sflag [#allocation7], 1
    %14 = vsyncpa %s13, 0
    %15 = vsyncpa [#allocation10], 0
    %16 = vsyncpa [#allocation5], 0
    %s17 = scalar_lea.sflag [#allocation5], 1
    %18 = vsyncpa %s17, 0
    loop: start=0, step=1, limit=4
    $region2: #{tpu_custom_call.1} parent=1 // loop_pre_header
      _
    $region3: #{tpu_custom_call.1} parent=1 // loop_header
      %s20 = sphi 0, %s24
      %p21 = scmp.ge.s32.totalorder %s20, 4
      %s27 = sphi 0, %s46
      %s28 = sphi 0, %s42
      %s29 = sphi 0, %s38
      %s30 = sphi 0, %s27
      %s31 = sphi 0, %s28
      %s32 = sphi 0, %s29
      %s33 = sphi 0, %s30
      %s34 = sphi 0, %s31
      %s35 = sphi 0, %s32
      %s53 = sphi 0, %s55
      %s56 = sphi 0, %s53
      %s57 = sphi 0, %s56
      %s73 = sphi 0, %s57
      %s79 = sphi 0, %s81
      %s82 = sphi 0, %s79
      %s83 = sphi 0, %s82
      %s99 = sphi 0, %s83
      %s105 = sphi 0, %s107
      %s108 = sphi 0, %s105
      %s109 = sphi 0, %s108
      %s125 = sphi 0, %s109
      %s129 = sphi 0, %s129
      %s131 = sphi 0, %s129
      %s132 = sphi 0, %s131
      %s146 = sphi 0, %s132
      %s156 = sphi 0, %s158
      %s159 = sphi 0, %s156
      %s160 = sphi 0, %s159
      %s176 = sphi 0, %s160
    $region4: #{tpu_custom_call.1} parent=1 // loop_header_branch
      %23 = sbr.rel (%p21) target = $region8
    $region5: #{tpu_custom_call.1} parent=1 // loop_body
      %s25 = ssub.s32 %s20, 1
      %s26 = ssub.s32 %s20, 2
      %s36 = sadd.s32 1, %s29
      %p37 = scmp.ge.s32.totalorder %s36, 1
      %s38 = scalar_select %p37, 0, %s36
      %s39 = sadd.s32 1, %s28
      %s40 = scalar_select %p37, %s39, %s28
      %p41 = scmp.ge.s32.totalorder %s40, 1
      %s42 = scalar_select %p41, 0, %s40
      %s43 = sadd.s32 1, %s27
      %s44 = scalar_select %p41, %s43, %s27
      %p45 = scmp.ge.s32.totalorder %s44, 2
      %s46 = scalar_select %p45, 0, %s44
      %s47 = sadd.s32 %s28, %s29
      %s48 = sadd.s32 %s42, %s38
      %s49 = ssub.s32 %s27, %s46
      %s50 = ssub.s32 %s47, %s48
      %s51 = sor.u32 %s49, %s50
      %p52 = scmp.eq.s32.totalorder %s51, 0
      %s54 = sadd.s32 %s53, 1
      %s55 = scalar_select %p52, %s53, %s54
      %p58 = pneg %p52
      %p59 = scmp.eq.s32.totalorder %s20, 1
      %p60 = por %p58, %p59
      %p61 = scmp.ne.s32.totalorder %s53, %s56
      %p62 = scmp.eq.s32.totalorder %s20, 0
      %p63 = por %p61, %p62
      %p64 = scmp.ne.s32.totalorder %s53, %s56
      %p65 = scmp.eq.s32.totalorder %s25, 1
      %p66 = por %p64, %p65
      %p67 = scmp.ne.s32.totalorder %s56, %s57
      %p68 = scmp.eq.s32.totalorder %s25, 0
      %p69 = por %p67, %p68
      %p70 = scmp.ne.s32.totalorder %s56, %s57
      %p71 = scmp.eq.s32.totalorder %s26, 1
      %p72 = por %p70, %p71
      %p74 = scmp.ne.s32.totalorder %s57, %s73
      %p75 = scmp.eq.s32.totalorder %s26, 0
      %p76 = por %p74, %p75
      %s77 = ssub.s32 %s27, %s46
      %p78 = scmp.eq.s32.totalorder %s77, 0
      %s80 = sadd.s32 %s79, 1
      %s81 = scalar_select %p78, %s79, %s80
      %p84 = pneg %p78
      %p85 = scmp.eq.s32.totalorder %s20, 1
      %p86 = por %p84, %p85
      %p87 = scmp.ne.s32.totalorder %s79, %s82
      %p88 = scmp.eq.s32.totalorder %s20, 0
      %p89 = por %p87, %p88
      %p90 = scmp.ne.s32.totalorder %s79, %s82
      %p91 = scmp.eq.s32.totalorder %s25, 1
      %p92 = por %p90, %p91
      %p93 = scmp.ne.s32.totalorder %s82, %s83
      %p94 = scmp.eq.s32.totalorder %s25, 0
      %p95 = por %p93, %p94
      %p96 = scmp.ne.s32.totalorder %s82, %s83
      %p97 = scmp.eq.s32.totalorder %s26, 1
      %p98 = por %p96, %p97
      %p100 = scmp.ne.s32.totalorder %s83, %s99
      %p101 = scmp.eq.s32.totalorder %s26, 0
      %p102 = por %p100, %p101
      %s103 = ssub.s32 %s27, %s46
      %p104 = scmp.eq.s32.totalorder %s103, 0
      %s106 = sadd.s32 %s105, 1
      %s107 = scalar_select %p104, %s105, %s106
      %p110 = pneg %p104
      %p111 = scmp.eq.s32.totalorder %s20, 1
      %p112 = por %p110, %p111
      %p113 = scmp.ne.s32.totalorder %s105, %s108
      %p114 = scmp.eq.s32.totalorder %s20, 0
      %p115 = por %p113, %p114
      %p116 = scmp.ne.s32.totalorder %s105, %s108
      %p117 = scmp.eq.s32.totalorder %s25, 1
      %p118 = por %p116, %p117
      %p119 = scmp.ne.s32.totalorder %s108, %s109
      %p120 = scmp.eq.s32.totalorder %s25, 0
      %p121 = por %p119, %p120
      %p122 = scmp.ne.s32.totalorder %s108, %s109
      %p123 = scmp.eq.s32.totalorder %s26, 1
      %p124 = por %p122, %p123
      %p126 = scmp.ne.s32.totalorder %s109, %s125
      %p127 = scmp.eq.s32.totalorder %s26, 0
      %p128 = por %p126, %p127
      %s130 = sadd.s32 %s129, 1
      %p133 = scmp.eq.s32.totalorder %s20, 1
      %p134 = scmp.ne.s32.totalorder %s129, %s131
      %p135 = scmp.eq.s32.totalorder %s20, 0
      %p136 = por %p134, %p135
      %p137 = scmp.ne.s32.totalorder %s129, %s131
      %p138 = scmp.eq.s32.totalorder %s25, 1
      %p139 = por %p137, %p138
      %p140 = scmp.ne.s32.totalorder %s131, %s132
      %p141 = scmp.eq.s32.totalorder %s25, 0
      %p142 = por %p140, %p141
      %p143 = scmp.ne.s32.totalorder %s131, %s132
      %p144 = scmp.eq.s32.totalorder %s26, 1
      %p145 = por %p143, %p144
      %p147 = scmp.ne.s32.totalorder %s132, %s146
      %p148 = scmp.eq.s32.totalorder %s26, 0
      %p149 = por %p147, %p148
      %s150 = sadd.s32 %s28, %s29
      %s151 = sadd.s32 %s42, %s38
      %s152 = ssub.s32 %s27, %s46
      %s153 = ssub.s32 %s150, %s151
      %s154 = sor.u32 %s152, %s153
      %p155 = scmp.eq.s32.totalorder %s154, 0
      %s157 = sadd.s32 %s156, 1
      %s158 = scalar_select %p155, %s156, %s157
      %p161 = pneg %p155
      %p162 = scmp.eq.s32.totalorder %s20, 1
      %p163 = por %p161, %p162
      %p164 = scmp.ne.s32.totalorder %s156, %s159
      %p165 = scmp.eq.s32.totalorder %s20, 0
      %p166 = por %p164, %p165
      %p167 = scmp.ne.s32.totalorder %s156, %s159
      %p168 = scmp.eq.s32.totalorder %s25, 1
      %p169 = por %p167, %p168
      %p170 = scmp.ne.s32.totalorder %s159, %s160
      %p171 = scmp.eq.s32.totalorder %s25, 0
      %p172 = por %p170, %p171
      %p173 = scmp.ne.s32.totalorder %s159, %s160
      %p174 = scmp.eq.s32.totalorder %s26, 1
      %p175 = por %p173, %p174
      %p177 = scmp.ne.s32.totalorder %s160, %s176
      %p178 = scmp.eq.s32.totalorder %s26, 0
      %p179 = por %p177, %p178
      %p180 = scmp.le.s32.totalorder 1, %s20
      %p181 = scmp.lt.s32.totalorder %s20, 3
      %p182 = pnand %p180, %p181
      %p183 = pneg %p182
      // Predicated region
      $region9: #{tpu_custom_call.1} parent=5 // pred_check
        _
      $region10: #{tpu_custom_call.1} parent=5 // pred_check_branch
        %185 = sbr.rel (%p182) target = $region12
      $region11: #{tpu_custom_call.1} parent=5 // pred_region
        %s186 = ssub.s32 %s20, 1
        // Predicated region
        $region13: #{tpu_custom_call.1} parent=11 // pred_check
          %p187 = pneg %p142
        $region14: #{tpu_custom_call.1} parent=11 // pred_check_branch
          %189 = sbr.rel (%p187) target = $region16
        $region15: #{tpu_custom_call.1} parent=11 // pred_region
          %s191 = ssub.s32 256, 256
          %192 = vsyncadd [#allocation10], %s191
          %s193 = sshll.u32 [#allocation9], 4
          %s194 = int_to_ptr.vmem [resolvable:$true] %s193
          %199 = dma.hbm_to_vmem [thread:$0]  %s3, 256, %s194, [#allocation10], 128, 128, 8
        $region16: #{tpu_custom_call.1} parent=11 // pred_fallthru
          _
      $region12: #{tpu_custom_call.1} parent=5 // pred_fallthru
        _
      %p200 = scmp.lt.s32.totalorder %s20, 2
      // Predicated region
      $region17: #{tpu_custom_call.1} parent=5 // pred_check
        %p201 = pneg %p200
      $region18: #{tpu_custom_call.1} parent=5 // pred_check_branch
        %203 = sbr.rel (%p201) target = $region20
      $region19: #{tpu_custom_call.1} parent=5 // pred_region
        // Predicated region
        $region21: #{tpu_custom_call.1} parent=19 // pred_check
          %p204 = pneg %p63
        $region22: #{tpu_custom_call.1} parent=19 // pred_check_branch
          %206 = sbr.rel (%p204) target = $region24
        $region23: #{tpu_custom_call.1} parent=19 // pred_region
          %s207 = sand.u32 %s53, 1
          %s208 = scalar_lea.sflag [#allocation4], %s207
          %s209 = sand.u32 %s53, 1
          %s210 = smul.addr %s209, 256
          %s211 = scalar_lea.vmem [#allocation3], %s210
          %s212 = sadd.s32 %s28, %s29
          %s213 = smul.u32 4, %s212
          %s215 = ssub.s32 4096, 4096
          %216 = vsyncadd %s208, %s215
          %s217 = smul.addr %s213, 2
          %s218 = smul.addr %s27, 32
          %s219 = sadd.s32 %s217, %s218
          %s220 = smul.addr %s219, 128
          %s221 = scalar_lea.hbm %s0, %s220
          %s222 = sshll.u32 %s211, 4
          %s223 = int_to_ptr.vmem [resolvable:$true] %s222
          %228 = dma.hbm_to_vmem [thread:$0]  %s221, 4096, %s223, %s208, 128, 128, 8
        $region24: #{tpu_custom_call.1} parent=19 // pred_fallthru
          _
        // Predicated region
        $region25: #{tpu_custom_call.1} parent=19 // pred_check
          %p229 = pneg %p89
        $region26: #{tpu_custom_call.1} parent=19 // pred_check_branch
          %231 = sbr.rel (%p229) target = $region28
        $region27: #{tpu_custom_call.1} parent=19 // pred_region
          %s232 = sand.u32 %s20, 1
          %s233 = scalar_lea.sflag [#allocation7], %s232
          %s234 = sand.u32 %s79, 1
          %s235 = smul.addr %s234, 64
          %s236 = scalar_lea.vmem [#allocation6], %s235
          %s238 = ssub.s32 1024, 1024
          %239 = vsyncadd %s233, %s238
          %s240 = smul.addr %s27, 8
          %s241 = smul.addr %s240, 128
          %s242 = scalar_lea.hbm %s1, %s241
          %s243 = sshll.u32 %s236, 4
          %s244 = int_to_ptr.vmem [resolvable:$true] %s243
          %249 = dma.hbm_to_vmem [thread:$0]  %s242, 1024, %s244, %s233, 128, 128, 8
        $region28: #{tpu_custom_call.1} parent=19 // pred_fallthru
          _
        // Predicated region
        $region29: #{tpu_custom_call.1} parent=19 // pred_check
          %p250 = pneg %p115
        $region30: #{tpu_custom_call.1} parent=19 // pred_check_branch
          %252 = sbr.rel (%p250) target = $region32
        $region31: #{tpu_custom_call.1} parent=19 // pred_region
          %s253 = sand.u32 %s20, 1
          %s254 = scalar_lea.sflag [#allocation7], %s253
          %s255 = sand.u32 %s105, 1
          %s256 = smul.addr %s255, 16
          %s257 = scalar_lea.vmem [#allocation8], %s256
          %s259 = ssub.s32 256, 256
          %260 = vsyncadd %s254, %s259
          %s261 = smul.addr %s27, 2
          %s262 = smul.addr %s261, 128
          %s263 = scalar_lea.hbm %s2, %s262
          %s264 = sshll.u32 %s257, 4
          %s265 = int_to_ptr.vmem [resolvable:$true] %s264
          %270 = dma.hbm_to_vmem [thread:$0]  %s263, 256, %s265, %s254, 128, 128, 8
        $region32: #{tpu_custom_call.1} parent=19 // pred_fallthru
          _
      $region20: #{tpu_custom_call.1} parent=5 // pred_fallthru
        _
      %p271 = scmp.le.s32.totalorder 1, %s20
      %p272 = scmp.lt.s32.totalorder %s20, 3
      %p273 = pnand %p271, %p272
      %p274 = pneg %p273
      // Predicated region
      $region33: #{tpu_custom_call.1} parent=5 // pred_check
        _
      $region34: #{tpu_custom_call.1} parent=5 // pred_check_branch
        %276 = sbr.rel (%p273) target = $region36
      $region35: #{tpu_custom_call.1} parent=5 // pred_region
        %s277 = ssub.s32 %s20, 1
        %s278 = sand.u32 %s56, 1
        %s279 = scalar_lea.sflag [#allocation4], %s278
        %s280 = sand.u32 %s56, 1
        %s281 = smul.addr %s280, 256
        %s282 = scalar_lea.vmem [#allocation3], %s281
        // Predicated region
        $region37: #{tpu_custom_call.1} parent=35 // pred_check
          %p283 = pneg %p69
        $region38: #{tpu_custom_call.1} parent=35 // pred_check_branch
          %285 = sbr.rel (%p283) target = $region40
        $region39: #{tpu_custom_call.1} parent=35 // pred_region
          %286 = dma.done %s279, 4096
        $region40: #{tpu_custom_call.1} parent=35 // pred_fallthru
          _
        %s287 = sand.u32 %s25, 1
        %s288 = scalar_lea.sflag [#allocation7], %s287
        %s289 = sand.u32 %s82, 1
        %s290 = smul.addr %s289, 64
        %s291 = scalar_lea.vmem [#allocation6], %s290
        // Predicated region
        $region41: #{tpu_custom_call.1} parent=35 // pred_check
          %p292 = pneg %p95
        $region42: #{tpu_custom_call.1} parent=35 // pred_check_branch
          %294 = sbr.rel (%p292) target = $region44
        $region43: #{tpu_custom_call.1} parent=35 // pred_region
          %295 = dma.done %s288, 1024
        $region44: #{tpu_custom_call.1} parent=35 // pred_fallthru
          _
        %s296 = sand.u32 %s25, 1
        %s297 = scalar_lea.sflag [#allocation7], %s296
        %s298 = sand.u32 %s108, 1
        %s299 = smul.addr %s298, 16
        %s300 = scalar_lea.vmem [#allocation8], %s299
        // Predicated region
        $region45: #{tpu_custom_call.1} parent=35 // pred_check
          %p301 = pneg %p121
        $region46: #{tpu_custom_call.1} parent=35 // pred_check_branch
          %303 = sbr.rel (%p301) target = $region48
        $region47: #{tpu_custom_call.1} parent=35 // pred_region
          %304 = dma.done %s297, 256
        $region48: #{tpu_custom_call.1} parent=35 // pred_fallthru
          _
        // Predicated region
        $region49: #{tpu_custom_call.1} parent=35 // pred_check
          %p305 = pneg %p142
        $region50: #{tpu_custom_call.1} parent=35 // pred_check_branch
          %307 = sbr.rel (%p305) target = $region52
        $region51: #{tpu_custom_call.1} parent=35 // pred_region
          %308 = dma.done [#allocation10], 256
        $region52: #{tpu_custom_call.1} parent=35 // pred_fallthru
          _
        %s309 = sand.u32 %s56, 1
        %s310 = scalar_lea.sflag [#allocation4], %s309
        %s311 = sand.u32 %s56, 1
        %s312 = smul.addr %s311, 256
        %s313 = scalar_lea.vmem [#allocation3], %s312
        %p314 = pneg %p69
        %p315 = pneg %p66
        %s316 = sand.u32 %s25, 1
        %s317 = scalar_lea.sflag [#allocation7], %s316
        %s318 = sand.u32 %s82, 1
        %s319 = smul.addr %s318, 64
        %s320 = scalar_lea.vmem [#allocation6], %s319
        %p321 = pneg %p95
        %p322 = pneg %p92
        %s323 = sand.u32 %s25, 1
        %s324 = scalar_lea.sflag [#allocation7], %s323
        %s325 = sand.u32 %s108, 1
        %s326 = smul.addr %s325, 16
        %s327 = scalar_lea.vmem [#allocation8], %s326
        %p328 = pneg %p121
        %p329 = pneg %p118
        %p330 = pneg %p142
        %p331 = pneg %p139
        %p332 = pneg %p172
        %p333 = pneg %p169
        %s334 = sand.u32 %s159, 1
        %s335 = scalar_lea.sflag [#allocation5], %s334
        %s336 = sand.u32 %s159, 1
        %s337 = smul.addr %s336, 32
        %s338 = scalar_lea.vmem [#allocation11], %s337
        %s339 = sadd.s32 %s31, %s32
        %s340 = smul.u32 4, %s339
        %s341 = sadd.s32 %s31, %s32
        %s342 = smul.u32 4, %s341
        %p343 = scmp.eq.s32.totalorder %s32, 0
        // Predicated region
        $region53: #{tpu_custom_call.1} parent=35 // pred_check
          %p344 = pneg %p343
        $region54: #{tpu_custom_call.1} parent=35 // pred_check_branch
          %346 = sbr.rel (%p344) target = $region56
        $region55: #{tpu_custom_call.1} parent=35 // pred_region
          %v347 = vld [vmem:[%s291] sm:$0xff]
          %v348 = vld [vmem:[%s300] sm:$0xff]
          %v349 = vsub.f32 %v348, %v347
          %v350 = vand.u32 2147483647, %v349
          %v351 = vsub.f32 0.0, %v350
          %v352 = vmul.f32 %v351, 1.442695
          %v353 = vpow.pop %v352
          %v354 = vld [vmem:[#allocation9] sm:$0xff]
          %v355 = vmul.f32 %v353, %v354
          %vm356 = vcmask 72704
          %357 = vst.msk [vmem:[#allocation2] sm:$0xff] %vm356, %v355
          %s358 = scalar_lea.vmem %s291, 16 [#allocation6]
          %v359 = vld [vmem:[%s358] sm:$0xff]
          %v360 = vld [vmem:[%s300] sm:$0xff]
          %v361 = vsub.f32 %v360, %v359
          %v362 = vand.u32 2147483647, %v361
          %v363 = vsub.f32 0.0, %v362
          %v364 = vmul.f32 %v363, 1.442695
          %v365 = vpow.pop %v364
          %v366 = vld [vmem:[#allocation9] sm:$0xff]
          %v367 = vmul.f32 %v365, %v366
          %s368 = scalar_lea.vmem [#allocation2], 8
          %369 = vst.msk [vmem:[%s368] sm:$0xff] %vm356, %v367
          %v370 = vld [vmem:[%s291] sm:$0xff]
          %s371 = scalar_lea.vmem %s300, 8 [#allocation8]
          %v372 = vld [vmem:[%s371] sm:$0xff]
          %v373 = vsub.f32 %v372, %v370
          %v374 = vand.u32 2147483647, %v373
          %v375 = vsub.f32 0.0, %v374
          %v376 = vmul.f32 %v375, 1.442695
          %v377 = vpow.pop %v376
          %s378 = scalar_lea.vmem [#allocation9], 8
          %v379 = vld [vmem:[%s378] sm:$0xff]
          %v380 = vmul.f32 %v377, %v379
          %s381 = scalar_lea.vmem [#allocation2], 16
          %382 = vst.msk [vmem:[%s381] sm:$0xff] %vm356, %v380
          %s383 = scalar_lea.vmem %s291, 32 [#allocation6]
          %v384 = vld [vmem:[%s383] sm:$0xff]
          %v385 = vld [vmem:[%s300] sm:$0xff]
          %v386 = vsub.f32 %v385, %v384
          %v387 = vand.u32 2147483647, %v386
          %v388 = vsub.f32 0.0, %v387
          %v389 = vmul.f32 %v388, 1.442695
          %v390 = vpow.pop %v389
          %v391 = vld [vmem:[#allocation9] sm:$0xff]
          %v392 = vmul.f32 %v390, %v391
          %s393 = scalar_lea.vmem [#allocation2], 24
          %394 = vst.msk [vmem:[%s393] sm:$0xff] %vm356, %v392
          %s395 = scalar_lea.vmem %s291, 48 [#allocation6]
          %v396 = vld [vmem:[%s395] sm:$0xff]
          %v397 = vld [vmem:[%s300] sm:$0xff]
          %v398 = vsub.f32 %v397, %v396
          %v399 = vand.u32 2147483647, %v398
          %v400 = vsub.f32 0.0, %v399
          %v401 = vmul.f32 %v400, 1.442695
          %v402 = vpow.pop %v401
          %v403 = vld [vmem:[#allocation9] sm:$0xff]
          %v404 = vmul.f32 %v402, %v403
          %s405 = scalar_lea.vmem [#allocation2], 32
          %406 = vst.msk [vmem:[%s405] sm:$0xff] %vm356, %v404
          %v407 = vld [vmem:[%s383] sm:$0xff]
          %v408 = vld [vmem:[%s371] sm:$0xff]
          %v409 = vsub.f32 %v408, %v407
          %v410 = vand.u32 2147483647, %v409
          %v411 = vsub.f32 0.0, %v410
          %v412 = vmul.f32 %v411, 1.442695
          %v413 = vpow.pop %v412
          %v414 = vld [vmem:[%s378] sm:$0xff]
          %v415 = vmul.f32 %v413, %v414
          %s416 = scalar_lea.vmem [#allocation2], 40
          %417 = vst.msk [vmem:[%s416] sm:$0xff] %vm356, %v415
          %v418 = vld [vmem:[%s291 + $0x1] sm:$0xff]
          %v419 = vld [vmem:[%s300] sm:$0xff]
          %v420 = vsub.f32 %v419, %v418
          %v421 = vand.u32 2147483647, %v420
          %v422 = vsub.f32 0.0, %v421
          %v423 = vmul.f32 %v422, 1.442695
          %v424 = vpow.pop %v423
          %v425 = vld [vmem:[#allocation9] sm:$0xff]
          %v426 = vmul.f32 %v424, %v425
          %s427 = scalar_lea.vmem [#allocation2], 48
          %428 = vst.msk [vmem:[%s427] sm:$0xff] %vm356, %v426
          %v429 = vld [vmem:[%s358 + $0x1] sm:$0xff]
          %v430 = vld [vmem:[%s300] sm:$0xff]
          %v431 = vsub.f32 %v430, %v429
          %v432 = vand.u32 2147483647, %v431
          %v433 = vsub.f32 0.0, %v432
          %v434 = vmul.f32 %v433, 1.442695
          %v435 = vpow.pop %v434
          %v436 = vld [vmem:[#allocation9] sm:$0xff]
          %v437 = vmul.f32 %v435, %v436
          %s438 = scalar_lea.vmem [#allocation2], 56
          %439 = vst.msk [vmem:[%s438] sm:$0xff] %vm356, %v437
          %v440 = vld [vmem:[%s291 + $0x1] sm:$0xff]
          %v441 = vld [vmem:[%s371] sm:$0xff]
          %v442 = vsub.f32 %v441, %v440
          %v443 = vand.u32 2147483647, %v442
          %v444 = vsub.f32 0.0, %v443
          %v445 = vmul.f32 %v444, 1.442695
          %v446 = vpow.pop %v445
          %v447 = vld [vmem:[%s378] sm:$0xff]
          %v448 = vmul.f32 %v446, %v447
          %s449 = scalar_lea.vmem [#allocation2], 64
          %450 = vst.msk [vmem:[%s449] sm:$0xff] %vm356, %v448
        $region56: #{tpu_custom_call.1} parent=35 // pred_fallthru
          _
        %v451 = vld [vmem:[%s282] sm:$0xff]
        %v452 = vld [vmem:[%s282 + $0x10] sm:$0xff]
        %v453 = vld [vmem:[%s282 + $0x20] sm:$0xff]
        %v454 = vld [vmem:[%s282 + $0x30] sm:$0xff]
        %v455 = vld [vmem:[#allocation2] sm:$0xff]
        %v456 = vmul.f32 %v451, %v455
        %v457 = vmul.f32 %v452, %v455
        %v458 = vmul.f32 %v453, %v455
        %v459 = vmul.f32 %v454, %v455
        %v460 = vadd.f32 %v456, 0.0
        %v461 = vadd.f32 %v457, 0.0
        %v462 = vadd.f32 %v458, 0.0
        %v463 = vadd.f32 %v459, 0.0
        %s464 = scalar_lea.vmem [#allocation2], 16
        %v465 = vld [vmem:[%s464] sm:$0xff]
        %v466 = vmul.f32 %v451, %v465
        %v467 = vmul.f32 %v452, %v465
        %v468 = vmul.f32 %v453, %v465
        %v469 = vmul.f32 %v454, %v465
        %v470 = vadd.f32 %v466, 0.0
        %v471 = vadd.f32 %v467, 0.0
        %v472 = vadd.f32 %v468, 0.0
        %v473 = vadd.f32 %v469, 0.0
        %s474 = scalar_lea.vmem %s282, 64 [#allocation3]
        %v475 = vld [vmem:[%s474] sm:$0xff]
        %v476 = vld [vmem:[%s474 + $0x10] sm:$0xff]
        %v477 = vld [vmem:[%s474 + $0x20] sm:$0xff]
        %v478 = vld [vmem:[%s474 + $0x30] sm:$0xff]
        %s479 = scalar_lea.vmem [#allocation2], 8
        %v480 = vld [vmem:[%s479] sm:$0xff]
        %v481 = vmul.f32 %v475, %v480
        %v482 = vmul.f32 %v476, %v480
        %v483 = vmul.f32 %v477, %v480
        %v484 = vmul.f32 %v478, %v480
        %v485 = vadd.f32 %v460, %v481
        %v486 = vadd.f32 %v461, %v482
        %v487 = vadd.f32 %v462, %v483
        %v488 = vadd.f32 %v463, %v484
        %s489 = scalar_lea.vmem %s282, 128 [#allocation3]
        %v490 = vld [vmem:[%s489] sm:$0xff]
        %v491 = vld [vmem:[%s489 + $0x10] sm:$0xff]
        %v492 = vld [vmem:[%s489 + $0x20] sm:$0xff]
        %v493 = vld [vmem:[%s489 + $0x30] sm:$0xff]
        %s494 = scalar_lea.vmem [#allocation2], 24
        %v495 = vld [vmem:[%s494] sm:$0xff]
        %v496 = vmul.f32 %v490, %v495
        %v497 = vmul.f32 %v491, %v495
        %v498 = vmul.f32 %v492, %v495
        %v499 = vmul.f32 %v493, %v495
        %v500 = vadd.f32 %v485, %v496
        %v501 = vadd.f32 %v486, %v497
        %v502 = vadd.f32 %v487, %v498
        %v503 = vadd.f32 %v488, %v499
        %s504 = scalar_lea.vmem [#allocation2], 40
        %v505 = vld [vmem:[%s504] sm:$0xff]
        %v506 = vmul.f32 %v490, %v505
        %v507 = vmul.f32 %v491, %v505
        %v508 = vmul.f32 %v492, %v505
        %v509 = vmul.f32 %v493, %v505
        %v510 = vadd.f32 %v470, %v506
        %v511 = vadd.f32 %v471, %v507
        %v512 = vadd.f32 %v472, %v508
        %v513 = vadd.f32 %v473, %v509
        %s514 = scalar_lea.vmem %s282, 192 [#allocation3]
        %v515 = vld [vmem:[%s514] sm:$0xff]
        %v516 = vld [vmem:[%s514 + $0x10] sm:$0xff]
        %v517 = vld [vmem:[%s514 + $0x20] sm:$0xff]
        %v518 = vld [vmem:[%s514 + $0x30] sm:$0xff]
        %s519 = scalar_lea.vmem [#allocation2], 32
        %v520 = vld [vmem:[%s519] sm:$0xff]
        %v521 = vmul.f32 %v515, %v520
        %v522 = vmul.f32 %v516, %v520
        %v523 = vmul.f32 %v517, %v520
        %v524 = vmul.f32 %v518, %v520
        %v525 = vadd.f32 %v500, %v521
        %v526 = vadd.f32 %v501, %v522
        %v527 = vadd.f32 %v502, %v523
        %v528 = vadd.f32 %v503, %v524
        %v529 = vld [vmem:[%s282 + $0x1] sm:$0xff]
        %v530 = vld [vmem:[%s282 + $0x11] sm:$0xff]
        %v531 = vld [vmem:[%s282 + $0x21] sm:$0xff]
        %v532 = vld [vmem:[%s282 + $0x31] sm:$0xff]
        %s533 = scalar_lea.vmem [#allocation2], 48
        %v534 = vld [vmem:[%s533] sm:$0xff]
        %v535 = vmul.f32 %v529, %v534
        %v536 = vmul.f32 %v530, %v534
        %v537 = vmul.f32 %v531, %v534
        %v538 = vmul.f32 %v532, %v534
        %v539 = vadd.f32 %v525, %v535
        %v540 = vadd.f32 %v526, %v536
        %v541 = vadd.f32 %v527, %v537
        %v542 = vadd.f32 %v528, %v538
        %s543 = scalar_lea.vmem [#allocation2], 64
        %v544 = vld [vmem:[%s543] sm:$0xff]
        %v545 = vmul.f32 %v529, %v544
        %v546 = vmul.f32 %v530, %v544
        %v547 = vmul.f32 %v531, %v544
        %v548 = vmul.f32 %v532, %v544
        %v549 = vadd.f32 %v510, %v545
        %v550 = vadd.f32 %v511, %v546
        %v551 = vadd.f32 %v512, %v547
        %v552 = vadd.f32 %v513, %v548
        %v553 = vld [vmem:[%s474 + $0x1] sm:$0xff]
        %v554 = vld [vmem:[%s474 + $0x11] sm:$0xff]
        %v555 = vld [vmem:[%s474 + $0x21] sm:$0xff]
        %v556 = vld [vmem:[%s474 + $0x31] sm:$0xff]
        %s557 = scalar_lea.vmem [#allocation2], 56
        %v558 = vld [vmem:[%s557] sm:$0xff]
        %v559 = vmul.f32 %v553, %v558
        %v560 = vmul.f32 %v554, %v558
        %v561 = vmul.f32 %v555, %v558
        %v562 = vmul.f32 %v556, %v558
        %v563 = vadd.f32 %v539, %v559
        %v564 = vadd.f32 %v540, %v560
        %v565 = vadd.f32 %v541, %v561
        %v566 = vadd.f32 %v542, %v562
        %571 = vrot.lane.b32.xlu0 %v549, 127
        %v572 = vpop.permute.xlu0 %571
        %573 = vrot.lane.b32.xlu0 %v550, 127
        %v574 = vpop.permute.xlu0 %573
        %575 = vrot.lane.b32.xlu0 %v551, 127
        %v576 = vpop.permute.xlu0 %575
        %577 = vrot.lane.b32.xlu0 %v552, 127
        %v578 = vpop.permute.xlu0 %577
        %v583 = vadd.f32 %v563, %v572
        %v584 = vadd.f32 %v564, %v574
        %v585 = vadd.f32 %v565, %v576
        %v586 = vadd.f32 %v566, %v578
        %vm587 = vcmask 64512
        %588 = vst.msk [vmem:[%s338] sm:$0xff] %vm587, %v583
        %589 = vst.msk [vmem:[%s338 + $0x8] sm:$0xff] %vm587, %v584
        %590 = vst.msk [vmem:[%s338 + $0x10] sm:$0xff] %vm587, %v585
        %591 = vst.msk [vmem:[%s338 + $0x18] sm:$0xff] %vm587, %v586
        %s592 = sand.u32 %s159, 1
        %s593 = scalar_lea.sflag [#allocation5], %s592
        %s594 = sand.u32 %s159, 1
        %s595 = smul.addr %s594, 32
        %s596 = scalar_lea.vmem [#allocation11], %s595
        // Predicated region
        $region57: #{tpu_custom_call.1} parent=35 // pred_check
          %p597 = pneg %p169
        $region58: #{tpu_custom_call.1} parent=35 // pred_check_branch
          %599 = sbr.rel (%p597) target = $region60
        $region59: #{tpu_custom_call.1} parent=35 // pred_region
          %s600 = sadd.s32 %s31, %s32
          %s601 = smul.u32 4, %s600
          %s603 = ssub.s32 512, 512
          %604 = vsyncadd %s593, %s603
          %s605 = smul.addr %s30, 4
          %s606 = sadd.s32 %s601, %s605
          %s607 = smul.addr %s606, 128
          %s608 = scalar_lea.hbm %s4, %s607
          %s609 = sshll.u32 %s596, 4
          %s610 = int_to_ptr.vmem [resolvable:$true] %s609
          %615 = dma.vmem_to_hbm [thread:$0]  %s610, 512, %s608, %s593, 128, 128, 8
        $region60: #{tpu_custom_call.1} parent=35 // pred_fallthru
          _
      $region36: #{tpu_custom_call.1} parent=5 // pred_fallthru
        _
      %p616 = scmp.le.s32.totalorder 2, %s20
      // Predicated region
      $region61: #{tpu_custom_call.1} parent=5 // pred_check
        %p617 = pneg %p616
      $region62: #{tpu_custom_call.1} parent=5 // pred_check_branch
        %619 = sbr.rel (%p617) target = $region64
      $region63: #{tpu_custom_call.1} parent=5 // pred_region
        %s620 = ssub.s32 %s20, 2
        // Predicated region
        $region65: #{tpu_custom_call.1} parent=63 // pred_check
          %p621 = pneg %p175
        $region66: #{tpu_custom_call.1} parent=63 // pred_check_branch
          %623 = sbr.rel (%p621) target = $region68
        $region67: #{tpu_custom_call.1} parent=63 // pred_region
          %s624 = sand.u32 %s160, 1
          %s625 = scalar_lea.sflag [#allocation5], %s624
          %s626 = sand.u32 %s160, 1
          %s627 = smul.addr %s626, 32
          %s628 = scalar_lea.vmem [#allocation11], %s627
          %629 = dma.done %s625, 512
        $region68: #{tpu_custom_call.1} parent=63 // pred_fallthru
          _
      $region64: #{tpu_custom_call.1} parent=5 // pred_fallthru
        _
    $region6: #{tpu_custom_call.1} parent=1 // loop_footer
      %s24 = sadd.s32 1, %s20
    $region7: #{tpu_custom_call.1} parent=1 // loop_footer_branch
      %19 = sbr.rel target = $region3
    $region8: #{tpu_custom_call.1} parent=1 // loop_exit
      _
    %630 = vsyncpa [#allocation4], 1
    %s631 = scalar_lea.sflag [#allocation4], 1
    %632 = vsyncpa %s631, 1
    %633 = vsyncpa [#allocation7], 1
    %s634 = scalar_lea.sflag [#allocation7], 1
    %635 = vsyncpa %s634, 1
    %636 = vsyncpa [#allocation10], 1
    %637 = vsyncpa [#allocation5], 1
    %s638 = scalar_lea.sflag [#allocation5], 1
    %639 = vsyncpa %s638, 1

</llo_original>
